<compile_context>
chip_gen: v6e
topology: v6e:2x2x1
jax: 0.10.0
libtpu: 0.0.40
codegen_flags: <defaults>
</compile_context>

<pallas_src>
import jax
import jax.numpy as jnp
from jax.experimental import pallas as pl
from jax.experimental.pallas import tpu as pltpu

LANE = 128  # TPU lane width
SUBLANE = 8  # TPU sublane width


def _round_up(n, m):
    return ((n + m - 1) // m) * m


def _num_tensorcores():
    """2 on v7x (dual TensorCore), 1 on v5e/v6e (and anything unknown)."""
    try:
        kind = jax.devices()[0].device_kind.lower()
    except Exception:  # pragma: no cover - defensive
        kind = ""
    return 2 if ("v7" in kind or "7x" in kind) else 1


def _pick_grid(B):
    """Choose (tile_b, n_tiles) per generation.

    Single-TC: one grid step for B<=512, ~512-row tiles beyond (per-step
    overhead < 5%).  Dual-TC (v7x): even number of grid steps so the second
    TensorCore always gets a balanced share.
    """
    n_tc = _num_tensorcores()
    if n_tc == 1:
        n_tiles = max(1, pl.cdiv(B, 512))
    else:
        n_tiles = _round_up(max(1, pl.cdiv(B, 512)), 2)  # even split for 2 TCs
    tile_b = _round_up(pl.cdiv(B, n_tiles), SUBLANE)
    n_tiles = pl.cdiv(B, tile_b)
    if n_tc == 2 and n_tiles % 2 == 1:
        n_tiles += 1  # keep the core split balanced (extra tile is padded rows)
    return tile_b, n_tiles


def tblock_kernel(x_ref, w1_ref, w2_ref, w3_ref, bias_ref, out_ref):
    hidden = w1_ref.shape[1]
    out_pad = w3_ref.shape[1]
    b = bias_ref[...]                                    # (3, LANE) f32, one tile

    # ---- block 1: relu(cat([a, s], 1) @ W1 + b1) ----
    # concat + bf16 cast + lane padding already done in the wrapper -> single
    # K=128 MXU matmul on a bf16 activation tile, f32 accumulation.
    h = jnp.dot(x_ref[...], w1_ref[...], preferred_element_type=jnp.float32)
    h = jnp.maximum(h + b[0:1, :hidden], 0.0)            # f32 bias + ReLU (VPU)

    # ---- block 2 ----
    h = jnp.dot(h.astype(jnp.bfloat16), w2_ref[...],
                preferred_element_type=jnp.float32)
    h = jnp.maximum(h + b[1:2, :hidden], 0.0)

    # ---- block 3 (ReLU on the last layer too, matching the PyTorch loop) ----
    h = jnp.dot(h.astype(jnp.bfloat16), w3_ref[...],
                preferred_element_type=jnp.float32)
    out_ref[...] = jnp.maximum(h + b[2:3, :out_pad], 0.0)


def tblock_forward(action, state, params, *, tile_b=None):
    """Fused TBlock forward: concat + 3x(Linear, ReLU) in one pallas_call.

    Call this inside jax.jit so the concat/cast/pad and the final slice fuse
    with the surrounding model (they are as expensive as the kernel at these
    shapes if left unfused).
    """
    w1, w2, w3, bias = params["w1"], params["w2"], params["w3"], params["bias"]
    out_dim = params["out_dim"]
    in_pad = w1.shape[0]      # lane-dense padded feature dim (multiple of 128)
    hidden = w1.shape[1]
    out_pad = w3.shape[1]

    # Concat once in the wrapper and cast to bf16 there (halves activation DMA;
    # identical numerics: the dot rounds operands to bf16 either way).
    x = jnp.concatenate([action, state], axis=1).astype(jnp.bfloat16)
    B, in_dim = x.shape
    assert in_dim <= in_pad, (in_dim, in_pad)

    if tile_b is None:
        tile_b, n_tiles = _pick_grid(B)
    else:
        assert tile_b % SUBLANE == 0, "tile_b must be a multiple of 8 (sublane)"
        n_tiles = pl.cdiv(B, tile_b)
    b_pad = n_tiles * tile_b

    # One fused pad handles both batch rounding and feature lane-padding.
    if b_pad != B or in_pad != in_dim:
        x = jnp.pad(x, ((0, b_pad - B), (0, in_pad - in_dim)))

    out_padded = pl.pallas_call(
        tblock_kernel,
        out_shape=jax.ShapeDtypeStruct((b_pad, out_pad), jnp.float32),
        grid=(n_tiles,),
        in_specs=[
            pl.BlockSpec((tile_b, in_pad), lambda i: (i, 0)),     # activations
            pl.BlockSpec((in_pad, hidden), lambda i: (0, 0)),     # W1 (resident)
            pl.BlockSpec((hidden, hidden), lambda i: (0, 0)),     # W2 (resident)
            pl.BlockSpec((hidden, out_pad), lambda i: (0, 0)),    # W3 (resident)
            pl.BlockSpec(bias.shape, lambda i: (0, 0)),           # packed biases
        ],
        out_specs=pl.BlockSpec((tile_b, out_pad), lambda i: (i, 0)),
        compiler_params=pltpu.CompilerParams(
            dimension_semantics=("parallel",)),                   # v7x: 2nd TC
    )(x, w1, w2, w3, bias)

    return out_padded[:B, :out_dim]


def init_params(key, action_dim, state_dim, hidden_dim, out_dim):
    """Deterministic synthetic parameters (module __init__ only fixes shapes).

    Weights stored bf16 (MXU-native, accepted trade-off vs. f32 nn.Linear);
    W1 zero-padded to a lane-dense K (multiple of 128), W3/bias3 zero-padded
    to a lane-dense output width; all biases packed into one (3, 128) f32 tile.
    """
    in_dim = action_dim + state_dim
    assert hidden_dim % LANE == 0, "hidden_dim must be lane-dense (multiple of 128)"
    in_pad = _round_up(in_dim, LANE)
    out_pad = _round_up(out_dim, LANE)

    ks = jax.random.split(key, 6)
    s1 = 1.0 / jnp.sqrt(in_dim)
    s2 = 1.0 / jnp.sqrt(hidden_dim)
    w1 = jax.random.uniform(ks[0], (in_dim, hidden_dim), jnp.float32, -s1, s1)
    b1 = jax.random.uniform(ks[1], (hidden_dim,), jnp.float32, -s1, s1)
    w2 = jax.random.uniform(ks[2], (hidden_dim, hidden_dim), jnp.float32, -s2, s2)
    b2 = jax.random.uniform(ks[3], (hidden_dim,), jnp.float32, -s2, s2)
    w3 = jax.random.uniform(ks[4], (hidden_dim, out_dim), jnp.float32, -s2, s2)
    b3 = jax.random.uniform(ks[5], (out_dim,), jnp.float32, -s2, s2)

    # Lane-dense zero padding (padded rows/cols are exact zeros -> no effect).
    w1p = jnp.zeros((in_pad, hidden_dim), jnp.float32).at[:in_dim, :].set(w1)
    w3p = jnp.zeros((hidden_dim, out_pad), jnp.float32).at[:, :out_dim].set(w3)
    b3p = jnp.zeros((out_pad,), jnp.float32).at[:out_dim].set(b3)

    # Pack all biases into one (3, width) f32 tile.
    width = max(hidden_dim, out_pad)
    bias = (jnp.zeros((3, width), jnp.float32)
            .at[0, :hidden_dim].set(b1)
            .at[1, :hidden_dim].set(b2)
            .at[2, :out_pad].set(b3p))

    return dict(
        w1=w1p.astype(jnp.bfloat16),
        w2=w2.astype(jnp.bfloat16),
        w3=w3p.astype(jnp.bfloat16),
        bias=bias,
        out_dim=out_dim,
        in_dim=in_dim,
    )


def tblock_ref(action, state, params):
    """Plain-JAX reference with identical numerics (bf16 operands, f32 accum)."""
    w1, w2, w3, bias = params["w1"], params["w2"], params["w3"], params["bias"]
    out_dim = params["out_dim"]
    in_dim = params["in_dim"]
    hidden = w1.shape[1]
    out_pad = w3.shape[1]

    def layer(h, w, b):
        y = jnp.dot(h.astype(jnp.bfloat16), w,
                    preferred_element_type=jnp.float32) + b
        return jnp.maximum(y, 0.0)

    x = jnp.concatenate([action, state], axis=1).astype(jnp.float32)  # torch.cat(dim=1)
    h = layer(x, w1[:in_dim], bias[0:1, :hidden])                     # relu(block1(x))
    h = layer(h, w2, bias[1:2, :hidden])                              # relu(block2(x))
    h = layer(h, w3, bias[2:3, :out_pad])                             # relu(block3(x))
    return h[:, :out_dim]


if __name__ == "__main__":
    B, ACTION_DIM, STATE_DIM, HIDDEN, OUT = 256, 4, 28, 128, 32

    key = jax.random.PRNGKey(0)
    k_act, k_state, k_params = jax.random.split(key, 3)
    action = jax.random.normal(k_act, (B, ACTION_DIM), jnp.float32)
    state = jax.random.normal(k_state, (B, STATE_DIM), jnp.float32)
    params = init_params(k_params, ACTION_DIM, STATE_DIM, HIDDEN, OUT)

    # jit the wrapper so concat/cast/pad/slice fuse around the pallas_call.
    fwd = jax.jit(lambda a, s: tblock_forward(a, s, params))
    out = jax.block_until_ready(fwd(action, state))
    ref = tblock_ref(action, state, params)

    assert out.shape == (B, OUT), out.shape
    assert jnp.allclose(out, ref, atol=5e-3, rtol=5e-3), \
        float(jnp.max(jnp.abs(out - ref)))

    print("KERNEL_OK")
</pallas_src>

<mosaic_0001>
module attributes {stable_mosaic.version = 11 : i64} {
  func.func @tblock_kernel(%arg0: i32, %arg1: memref<256x128xbf16, #tpu.memory_space<vmem>>, %arg2: memref<128x128xbf16, #tpu.memory_space<vmem>>, %arg3: memref<128x128xbf16, #tpu.memory_space<vmem>>, %arg4: memref<128x128xbf16, #tpu.memory_space<vmem>>, %arg5: memref<3x128xf32, #tpu.memory_space<vmem>>, %arg6: memref<256x128xf32, #tpu.memory_space<vmem>>) attributes {dimension_semantics = [#tpu.dimension_semantics<parallel>], iteration_bounds = array<i64: 1>, scalar_prefetch = 0 : i64, scratch_operands = 0 : i64, tpu.core_type = #tpu.core_type<tc>, window_params = [{transform_indices = @transform_0, window_bounds = array<i64: 256, 128>}, {pipeline_mode = #tpu.pipeline_mode<synchronous>, transform_indices = @transform_1, window_bounds = array<i64: 128, 128>}, {pipeline_mode = #tpu.pipeline_mode<synchronous>, transform_indices = @transform_2, window_bounds = array<i64: 128, 128>}, {pipeline_mode = #tpu.pipeline_mode<synchronous>, transform_indices = @transform_3, window_bounds = array<i64: 128, 128>}, {pipeline_mode = #tpu.pipeline_mode<synchronous>, transform_indices = @transform_4, window_bounds = array<i64: 3, 128>}, {transform_indices = @transform_5, window_bounds = array<i64: 256, 128>}]} {
    %c0 = arith.constant 0 : index
    %c0_0 = arith.constant 0 : index
    %0 = vector.load %arg5[%c0, %c0_0] : memref<3x128xf32, #tpu.memory_space<vmem>>, vector<3x128xf32>
    %c0_1 = arith.constant 0 : index
    %c0_2 = arith.constant 0 : index
    %1 = vector.load %arg1[%c0_1, %c0_2] : memref<256x128xbf16, #tpu.memory_space<vmem>>, vector<256x128xbf16>
    %c0_3 = arith.constant 0 : index
    %c0_4 = arith.constant 0 : index
    %2 = vector.load %arg2[%c0_3, %c0_4] : memref<128x128xbf16, #tpu.memory_space<vmem>>, vector<128x128xbf16>
    %cst = arith.constant dense<0.000000e+00> : vector<256x128xf32>
    %3 = tpu.matmul %1, %2, %cst {dimension_numbers = #tpu.dot_dimension_numbers<[1], [0], [0], [1], [0, 0, 1, 1], [], []>} : vector<256x128xbf16>, vector<128x128xbf16>, vector<256x128xf32> -> vector<256x128xf32>
    %4 = vector.extract_strided_slice %0 {offsets = [0, 0], sizes = [1, 128], strides = [1, 1]} : vector<3x128xf32> to vector<1x128xf32>
    %5 = vector.broadcast %4 : vector<1x128xf32> to vector<256x128xf32>
    %6 = arith.addf %3, %5 : vector<256x128xf32>
    %cst_5 = arith.constant 0.000000e+00 : f32
    %7 = vector.broadcast %cst_5 : f32 to vector<256x128xf32>
    %8 = arith.maximumf %6, %7 : vector<256x128xf32>
    %9 = arith.truncf %8 : vector<256x128xf32> to vector<256x128xbf16>
    %c0_6 = arith.constant 0 : index
    %c0_7 = arith.constant 0 : index
    %10 = vector.load %arg3[%c0_6, %c0_7] : memref<128x128xbf16, #tpu.memory_space<vmem>>, vector<128x128xbf16>
    %cst_8 = arith.constant dense<0.000000e+00> : vector<256x128xf32>
    %11 = tpu.matmul %9, %10, %cst_8 {dimension_numbers = #tpu.dot_dimension_numbers<[1], [0], [0], [1], [0, 0, 1, 1], [], []>} : vector<256x128xbf16>, vector<128x128xbf16>, vector<256x128xf32> -> vector<256x128xf32>
    %12 = vector.extract_strided_slice %0 {offsets = [1, 0], sizes = [1, 128], strides = [1, 1]} : vector<3x128xf32> to vector<1x128xf32>
    %13 = vector.broadcast %12 : vector<1x128xf32> to vector<256x128xf32>
    %14 = arith.addf %11, %13 : vector<256x128xf32>
    %cst_9 = arith.constant 0.000000e+00 : f32
    %15 = vector.broadcast %cst_9 : f32 to vector<256x128xf32>
    %16 = arith.maximumf %14, %15 : vector<256x128xf32>
    %17 = arith.truncf %16 : vector<256x128xf32> to vector<256x128xbf16>
    %c0_10 = arith.constant 0 : index
    %c0_11 = arith.constant 0 : index
    %18 = vector.load %arg4[%c0_10, %c0_11] : memref<128x128xbf16, #tpu.memory_space<vmem>>, vector<128x128xbf16>
    %cst_12 = arith.constant dense<0.000000e+00> : vector<256x128xf32>
    %19 = tpu.matmul %17, %18, %cst_12 {dimension_numbers = #tpu.dot_dimension_numbers<[1], [0], [0], [1], [0, 0, 1, 1], [], []>} : vector<256x128xbf16>, vector<128x128xbf16>, vector<256x128xf32> -> vector<256x128xf32>
    %20 = vector.extract_strided_slice %0 {offsets = [2, 0], sizes = [1, 128], strides = [1, 1]} : vector<3x128xf32> to vector<1x128xf32>
    %21 = vector.broadcast %20 : vector<1x128xf32> to vector<256x128xf32>
    %22 = arith.addf %19, %21 : vector<256x128xf32>
    %cst_13 = arith.constant 0.000000e+00 : f32
    %23 = vector.broadcast %cst_13 : f32 to vector<256x128xf32>
    %24 = arith.maximumf %22, %23 : vector<256x128xf32>
    %c0_14 = arith.constant 0 : index
    %c0_15 = arith.constant 0 : index
    %25 = vector.load %arg6[%c0_14, %c0_15] : memref<256x128xf32, #tpu.memory_space<vmem>>, vector<256x128xf32>
    tpu.vector_store %arg6[%c0_14, %c0_15], %24 {strides = array<i32>} : memref<256x128xf32, #tpu.memory_space<vmem>>, vector<256x128xf32>,
    return
  }
  func.func @transform_0(%arg0: i32) -> (i32, i32) {
    %c0_i32 = arith.constant 0 : i32
    %c0_i32_0 = arith.constant 0 : i32
    return %arg0, %c0_i32 : i32, i32
  }
  func.func @transform_1(%arg0: i32) -> (i32, i32) {
    %c0_i32 = arith.constant 0 : i32
    %c0_i32_0 = arith.constant 0 : i32
    %c0_i32_1 = arith.constant 0 : i32
    return %c0_i32, %c0_i32_0 : i32, i32
  }
  func.func @transform_2(%arg0: i32) -> (i32, i32) {
    %c0_i32 = arith.constant 0 : i32
    %c0_i32_0 = arith.constant 0 : i32
    %c0_i32_1 = arith.constant 0 : i32
    return %c0_i32, %c0_i32_0 : i32, i32
  }
  func.func @transform_3(%arg0: i32) -> (i32, i32) {
    %c0_i32 = arith.constant 0 : i32
    %c0_i32_0 = arith.constant 0 : i32
    %c0_i32_1 = arith.constant 0 : i32
    return %c0_i32, %c0_i32_0 : i32, i32
  }
  func.func @transform_4(%arg0: i32) -> (i32, i32) {
    %c0_i32 = arith.constant 0 : i32
    %c0_i32_0 = arith.constant 0 : i32
    %c0_i32_1 = arith.constant 0 : i32
    return %c0_i32, %c0_i32_0 : i32, i32
  }
  func.func @transform_5(%arg0: i32) -> (i32, i32) {
    %c0_i32 = arith.constant 0 : i32
    %c0_i32_0 = arith.constant 0 : i32
    return %arg0, %c0_i32 : i32, i32
  }
}

</mosaic_0001>

<llo_original>
// kernel: _lambda_.1
$region0: #{_lambda_.1}
  #allocation0 [shape = 'u32[]', space=smem, size = 0x4, offset = 0x4, fixed_abs, tag = 'smem constant byte address 0x4 - core index']
  #allocation1 [shape = 'u32[144,128]{1,0:T(1,128)}', space=vmem, size = 0x12000, scoped, tag = 'internal scratch']
  %s0 = inlined_call_operand.vmem [shape: bf16[256,128], index: 0, kind: input, shape index: {}]
  %s1 = inlined_call_operand.vmem [shape: bf16[128,128], index: 1, kind: input, shape index: {}]
  %s2 = inlined_call_operand.vmem [shape: bf16[128,128], index: 2, kind: input, shape index: {}]
  %s3 = inlined_call_operand.vmem [shape: bf16[128,128], index: 3, kind: input, shape index: {}]
  %s4 = inlined_call_operand.vmem [shape: f32[3,128], index: 4, kind: input, shape index: {}]
  %s5 = inlined_call_operand.vmem [shape: f32[256,128], index: 5, kind: output, shape index: {}]
  %s6 = sld [smem:[#allocation0]]
  $region30: #{_lambda_.1} parent=0
    _
  %s8 = ssub.s32 1, %s6
  %s9 = scalar_select 0, %s8, %s6
  // Predicated region
  $region2: #{_lambda_.1} parent=0 // pred_check
    _
  $region3: #{_lambda_.1} parent=0 // pred_check_branch
    %11 = sbr.rel (0) target = $region5
  $region4: #{_lambda_.1} parent=0 // pred_region
    _
  $region5: #{_lambda_.1} parent=0 // pred_fallthru
    _
  // Predicated region
  $region6: #{_lambda_.1} parent=0 // pred_check
    _
  $region7: #{_lambda_.1} parent=0 // pred_check_branch
    %13 = sbr.rel (0) target = $region9
  $region8: #{_lambda_.1} parent=0 // pred_region
    _
  $region9: #{_lambda_.1} parent=0 // pred_fallthru
    _
  // Predicated region
  $region10: #{_lambda_.1} parent=0 // pred_check
    _
  $region11: #{_lambda_.1} parent=0 // pred_check_branch
    %15 = sbr.rel (0) target = $region13
  $region12: #{_lambda_.1} parent=0 // pred_region
    _
  $region13: #{_lambda_.1} parent=0 // pred_fallthru
    _
  // Predicated region
  $region14: #{_lambda_.1} parent=0 // pred_check
    _
  $region15: #{_lambda_.1} parent=0 // pred_check_branch
    %17 = sbr.rel (0) target = $region17
  $region16: #{_lambda_.1} parent=0 // pred_region
    _
  $region17: #{_lambda_.1} parent=0 // pred_fallthru
    _
  // Predicated region
  $region18: #{_lambda_.1} parent=0 // pred_check
    _
  $region19: #{_lambda_.1} parent=0 // pred_check_branch
    %19 = sbr.rel (0) target = $region21
  $region20: #{_lambda_.1} parent=0 // pred_region
    _
  $region21: #{_lambda_.1} parent=0 // pred_fallthru
    _
  %v21 = vld [vmem:[%s4] sm:$0x7]
  %v22 = vld [vmem:[%s0] sm:$0xf]
  %v23 = vld [vmem:[%s0 + $0x4] sm:$0xf]
  %v24 = vld [vmem:[%s0 + $0x8] sm:$0xf]
  %v25 = vld [vmem:[%s0 + $0xc] sm:$0xf]
  %v26 = vld [vmem:[%s0 + $0x10] sm:$0xf]
  %v27 = vld [vmem:[%s0 + $0x14] sm:$0xf]
  %v28 = vld [vmem:[%s0 + $0x18] sm:$0xf]
  %v29 = vld [vmem:[%s0 + $0x1c] sm:$0xf]
  %v30 = vld [vmem:[%s0 + $0x20] sm:$0xf]
  %v31 = vld [vmem:[%s0 + $0x24] sm:$0xf]
  %v32 = vld [vmem:[%s0 + $0x28] sm:$0xf]
  %v33 = vld [vmem:[%s0 + $0x2c] sm:$0xf]
  %v34 = vld [vmem:[%s0 + $0x30] sm:$0xf]
  %v35 = vld [vmem:[%s0 + $0x34] sm:$0xf]
  %v36 = vld [vmem:[%s0 + $0x38] sm:$0xf]
  %v37 = vld [vmem:[%s0 + $0x3c] sm:$0xf]
  %v38 = vld [vmem:[%s0 + $0x40] sm:$0xf]
  %v39 = vld [vmem:[%s0 + $0x44] sm:$0xf]
  %v40 = vld [vmem:[%s0 + $0x48] sm:$0xf]
  %v41 = vld [vmem:[%s0 + $0x4c] sm:$0xf]
  %v42 = vld [vmem:[%s0 + $0x50] sm:$0xf]
  %v43 = vld [vmem:[%s0 + $0x54] sm:$0xf]
  %v44 = vld [vmem:[%s0 + $0x58] sm:$0xf]
  %v45 = vld [vmem:[%s0 + $0x5c] sm:$0xf]
  %v46 = vld [vmem:[%s0 + $0x60] sm:$0xf]
  %v47 = vld [vmem:[%s0 + $0x64] sm:$0xf]
  %v48 = vld [vmem:[%s0 + $0x68] sm:$0xf]
  %v49 = vld [vmem:[%s0 + $0x6c] sm:$0xf]
  %v50 = vld [vmem:[%s0 + $0x70] sm:$0xf]
  %v51 = vld [vmem:[%s0 + $0x74] sm:$0xf]
  %v52 = vld [vmem:[%s0 + $0x78] sm:$0xf]
  %v53 = vld [vmem:[%s0 + $0x7c] sm:$0xf]
  %v54 = vld [vmem:[%s1] sm:$0xf]
  %v55 = vld [vmem:[%s1 + $0x4] sm:$0xf]
  %v56 = vld [vmem:[%s1 + $0x8] sm:$0xf]
  %v57 = vld [vmem:[%s1 + $0xc] sm:$0xf]
  %v58 = vld [vmem:[%s1 + $0x10] sm:$0xf]
  %v59 = vld [vmem:[%s1 + $0x14] sm:$0xf]
  %v60 = vld [vmem:[%s1 + $0x18] sm:$0xf]
  %v61 = vld [vmem:[%s1 + $0x1c] sm:$0xf]
  %v62 = vld [vmem:[%s1 + $0x20] sm:$0xf]
  %v63 = vld [vmem:[%s1 + $0x24] sm:$0xf]
  %v64 = vld [vmem:[%s1 + $0x28] sm:$0xf]
  %v65 = vld [vmem:[%s1 + $0x2c] sm:$0xf]
  %v66 = vld [vmem:[%s1 + $0x30] sm:$0xf]
  %v67 = vld [vmem:[%s1 + $0x34] sm:$0xf]
  %v68 = vld [vmem:[%s1 + $0x38] sm:$0xf]
  %v69 = vld [vmem:[%s1 + $0x3c] sm:$0xf]
  %v70 = vlaneseq
  %v71 = vshrl.u32 %v70, 7
  %v72 = vsub.s32 0, %v71
  %v73 = vrot.slane %v21, %v72
  %v106 = vunpack.c.l.b16 %v22
  %v107 = vunpack.c.l.b16 %v23
  %v108 = vunpack.c.l.b16 %v24
  %v109 = vunpack.c.l.b16 %v25
  %v110 = vunpack.c.l.b16 %v26
  %v111 = vunpack.c.l.b16 %v27
  %v112 = vunpack.c.l.b16 %v28
  %v113 = vunpack.c.l.b16 %v29
  %v114 = vunpack.c.l.b16 %v30
  %v115 = vunpack.c.l.b16 %v31
  %v116 = vunpack.c.l.b16 %v32
  %v117 = vunpack.c.l.b16 %v33
  %v118 = vunpack.c.l.b16 %v34
  %v119 = vunpack.c.l.b16 %v35
  %v120 = vunpack.c.l.b16 %v36
  %v121 = vunpack.c.l.b16 %v37
  %v122 = vunpack.c.l.b16 %v38
  %v123 = vunpack.c.l.b16 %v39
  %v124 = vunpack.c.l.b16 %v40
  %v125 = vunpack.c.l.b16 %v41
  %v126 = vunpack.c.l.b16 %v42
  %v127 = vunpack.c.l.b16 %v43
  %v128 = vunpack.c.l.b16 %v44
  %v129 = vunpack.c.l.b16 %v45
  %v130 = vunpack.c.l.b16 %v46
  %v131 = vunpack.c.l.b16 %v47
  %v132 = vunpack.c.l.b16 %v48
  %v133 = vunpack.c.l.b16 %v49
  %v134 = vunpack.c.l.b16 %v50
  %v135 = vunpack.c.l.b16 %v51
  %v136 = vunpack.c.l.b16 %v52
  %v137 = vunpack.c.l.b16 %v53
  %v138 = vpack.c.b16 %v107, %v106
  %v139 = vpack.c.b16 %v109, %v108
  %v140 = vpack.c.b16 %v111, %v110
  %v141 = vpack.c.b16 %v113, %v112
  %v142 = vpack.c.b16 %v115, %v114
  %v143 = vpack.c.b16 %v117, %v116
  %v144 = vpack.c.b16 %v119, %v118
  %v145 = vpack.c.b16 %v121, %v120
  %v146 = vpack.c.b16 %v123, %v122
  %v147 = vpack.c.b16 %v125, %v124
  %v148 = vpack.c.b16 %v127, %v126
  %v149 = vpack.c.b16 %v129, %v128
  %v150 = vpack.c.b16 %v131, %v130
  %v151 = vpack.c.b16 %v133, %v132
  %v152 = vpack.c.b16 %v135, %v134
  %v153 = vpack.c.b16 %v137, %v136
  %v186 = vunpack.c.l.b16 %v54
  %v187 = vunpack.c.l.b16 %v55
  %v188 = vunpack.c.l.b16 %v56
  %v189 = vunpack.c.l.b16 %v57
  %v190 = vunpack.c.l.b16 %v58
  %v191 = vunpack.c.l.b16 %v59
  %v192 = vunpack.c.l.b16 %v60
  %v193 = vunpack.c.l.b16 %v61
  %v194 = vunpack.c.l.b16 %v62
  %v195 = vunpack.c.l.b16 %v63
  %v196 = vunpack.c.l.b16 %v64
  %v197 = vunpack.c.l.b16 %v65
  %v198 = vunpack.c.l.b16 %v66
  %v199 = vunpack.c.l.b16 %v67
  %v200 = vunpack.c.l.b16 %v68
  %v201 = vunpack.c.l.b16 %v69
  %v202 = vpack.c.b16 %v187, %v186
  %v203 = vpack.c.b16 %v189, %v188
  %v204 = vpack.c.b16 %v191, %v190
  %v205 = vpack.c.b16 %v193, %v192
  %v206 = vpack.c.b16 %v195, %v194
  %v207 = vpack.c.b16 %v197, %v196
  %v208 = vpack.c.b16 %v199, %v198
  %v209 = vpack.c.b16 %v201, %v200
  %218 = vmatprep.subr.bf16.mxu0 0
  %219 = vmatpush1.bf16.msra.mxu0 %v209
  %220 = vmatprep.subr.bf16.mxu0 0
  %221 = vmatpush1.bf16.msra.mxu0 %v208
  %222 = vmatprep.subr.bf16.mxu0 0
  %223 = vmatpush1.bf16.msra.mxu0 %v207
  %224 = vmatprep.subr.bf16.mxu0 0
  %225 = vmatpush1.bf16.msra.mxu0 %v206
  %226 = vmatprep.subr.bf16.mxu0 0
  %227 = vmatpush1.bf16.msra.mxu0 %v205
  %228 = vmatprep.subr.bf16.mxu0 0
  %229 = vmatpush1.bf16.msra.mxu0 %v204
  %230 = vmatprep.subr.bf16.mxu0 0
  %231 = vmatpush1.bf16.msra.mxu0 %v203
  %232 = vmatprep.subr.bf16.mxu0 0
  %233 = vmatpush1.bf16.msra.mxu0 %v202
  %234 = vmatprep.subr.bf16.mxu0 0
  %235 = vmatpush2.bf16.msra.mxu0 0
  %236 = vmatprep.subr.bf16.mxu0 0
  %237 = vmatpush2.bf16.msra.mxu0 0
  %238 = vmatprep.subr.bf16.mxu0 0
  %239 = vmatpush2.bf16.msra.mxu0 0
  %240 = vmatprep.subr.bf16.mxu0 0
  %241 = vmatpush2.bf16.msra.mxu0 0
  %242 = vmatprep.subr.bf16.mxu0 0
  %243 = vmatpush2.bf16.msra.mxu0 0
  %244 = vmatprep.subr.bf16.mxu0 0
  %245 = vmatpush2.bf16.msra.mxu0 0
  %246 = vmatprep.subr.bf16.mxu0 0
  %247 = vmatpush2.bf16.msra.mxu0 0
  %248 = vmatprep.subr.bf16.mxu0 0
  %249 = vmatpush2.bf16.msra.mxu0 0
  %250 = vmatprep.mubr.bf16.mxu0 0
  %251 = vmatmul.mubr.bf16.gmra.mxu0 %v138
  %v252 = vpop.f32.mrf.mxu0
  %v253 = vadd.f32 %v73, %v252
  %v254 = vpop.f32.mrf.mxu0
  %v255 = vpop.f32.mrf.mxu0
  %v256 = vadd.f32 %v73, %v255
  %v257 = vpop.f32.mrf.mxu0
  %258 = vmatprep.mubr.bf16.mxu0 0
  %259 = vmatmul.mubr.bf16.gmra.mxu0 %v139
  %v260 = vpop.f32.mrf.mxu0
  %v261 = vadd.f32 %v73, %v260
  %v262 = vpop.f32.mrf.mxu0
  %v263 = vpop.f32.mrf.mxu0
  %v264 = vadd.f32 %v73, %v263
  %v265 = vpop.f32.mrf.mxu0
  %266 = vmatprep.mubr.bf16.mxu0 0
  %267 = vmatmul.mubr.bf16.gmra.mxu0 %v140
  %v268 = vpop.f32.mrf.mxu0
  %v269 = vadd.f32 %v73, %v268
  %v270 = vpop.f32.mrf.mxu0
  %v271 = vpop.f32.mrf.mxu0
  %v272 = vadd.f32 %v73, %v271
  %v273 = vpop.f32.mrf.mxu0
  %274 = vmatprep.mubr.bf16.mxu0 0
  %275 = vmatmul.mubr.bf16.gmra.mxu0 %v141
  %v276 = vpop.f32.mrf.mxu0
  %v277 = vadd.f32 %v73, %v276
  %v278 = vpop.f32.mrf.mxu0
  %v279 = vpop.f32.mrf.mxu0
  %v280 = vadd.f32 %v73, %v279
  %v281 = vpop.f32.mrf.mxu0
  %282 = vmatprep.mubr.bf16.mxu0 0
  %283 = vmatmul.mubr.bf16.gmra.mxu0 %v142
  %v284 = vpop.f32.mrf.mxu0
  %v285 = vadd.f32 %v73, %v284
  %v286 = vpop.f32.mrf.mxu0
  %v287 = vpop.f32.mrf.mxu0
  %v288 = vadd.f32 %v73, %v287
  %v289 = vpop.f32.mrf.mxu0
  %290 = vmatprep.mubr.bf16.mxu0 0
  %291 = vmatmul.mubr.bf16.gmra.mxu0 %v143
  %v292 = vpop.f32.mrf.mxu0
  %v293 = vadd.f32 %v73, %v292
  %v294 = vpop.f32.mrf.mxu0
  %v295 = vpop.f32.mrf.mxu0
  %v296 = vadd.f32 %v73, %v295
  %v297 = vpop.f32.mrf.mxu0
  %298 = vmatprep.mubr.bf16.mxu0 0
  %299 = vmatmul.mubr.bf16.gmra.mxu0 %v144
  %v300 = vpop.f32.mrf.mxu0
  %v301 = vadd.f32 %v73, %v300
  %v302 = vpop.f32.mrf.mxu0
  %v303 = vpop.f32.mrf.mxu0
  %v304 = vadd.f32 %v73, %v303
  %v305 = vpop.f32.mrf.mxu0
  %306 = vmatprep.mubr.bf16.mxu0 0
  %307 = vmatmul.mubr.bf16.gmra.mxu0 %v145
  %v308 = vpop.f32.mrf.mxu0
  %v309 = vadd.f32 %v73, %v308
  %v310 = vpop.f32.mrf.mxu0
  %v311 = vpop.f32.mrf.mxu0
  %v312 = vadd.f32 %v73, %v311
  %v313 = vpop.f32.mrf.mxu0
  %314 = vmatprep.mubr.bf16.mxu0 0
  %315 = vmatmul.mubr.bf16.gmra.mxu0 %v146
  %v316 = vpop.f32.mrf.mxu0
  %v317 = vadd.f32 %v73, %v316
  %v318 = vpop.f32.mrf.mxu0
  %v319 = vpop.f32.mrf.mxu0
  %v320 = vadd.f32 %v73, %v319
  %v321 = vpop.f32.mrf.mxu0
  %322 = vmatprep.mubr.bf16.mxu0 0
  %323 = vmatmul.mubr.bf16.gmra.mxu0 %v147
  %v324 = vpop.f32.mrf.mxu0
  %v325 = vadd.f32 %v73, %v324
  %v326 = vpop.f32.mrf.mxu0
  %v327 = vpop.f32.mrf.mxu0
  %v328 = vadd.f32 %v73, %v327
  %v329 = vpop.f32.mrf.mxu0
  %330 = vmatprep.mubr.bf16.mxu0 0
  %331 = vmatmul.mubr.bf16.gmra.mxu0 %v148
  %v332 = vpop.f32.mrf.mxu0
  %v333 = vadd.f32 %v73, %v332
  %v334 = vpop.f32.mrf.mxu0
  %v335 = vpop.f32.mrf.mxu0
  %v336 = vadd.f32 %v73, %v335
  %v337 = vpop.f32.mrf.mxu0
  %338 = vmatprep.mubr.bf16.mxu0 0
  %339 = vmatmul.mubr.bf16.gmra.mxu0 %v149
  %v340 = vpop.f32.mrf.mxu0
  %v341 = vadd.f32 %v73, %v340
  %v342 = vpop.f32.mrf.mxu0
  %v343 = vpop.f32.mrf.mxu0
  %v344 = vadd.f32 %v73, %v343
  %v345 = vpop.f32.mrf.mxu0
  %346 = vmatprep.mubr.bf16.mxu0 0
  %347 = vmatmul.mubr.bf16.gmra.mxu0 %v150
  %v348 = vpop.f32.mrf.mxu0
  %v349 = vadd.f32 %v73, %v348
  %v350 = vpop.f32.mrf.mxu0
  %v351 = vpop.f32.mrf.mxu0
  %v352 = vadd.f32 %v73, %v351
  %v353 = vpop.f32.mrf.mxu0
  %354 = vmatprep.mubr.bf16.mxu0 0
  %355 = vmatmul.mubr.bf16.gmra.mxu0 %v151
  %v356 = vpop.f32.mrf.mxu0
  %v357 = vadd.f32 %v73, %v356
  %v358 = vpop.f32.mrf.mxu0
  %v359 = vpop.f32.mrf.mxu0
  %v360 = vadd.f32 %v73, %v359
  %v361 = vpop.f32.mrf.mxu0
  %362 = vmatprep.mubr.bf16.mxu0 0
  %363 = vmatmul.mubr.bf16.gmra.mxu0 %v152
  %v364 = vpop.f32.mrf.mxu0
  %v365 = vadd.f32 %v73, %v364
  %v366 = vpop.f32.mrf.mxu0
  %v367 = vpop.f32.mrf.mxu0
  %v368 = vadd.f32 %v73, %v367
  %v369 = vpop.f32.mrf.mxu0
  %370 = vmatprep.mubr.bf16.mxu0 0
  %371 = vmatmul.mubr.bf16.gmra.mxu0 %v153
  %v372 = vpop.f32.mrf.mxu0
  %v373 = vadd.f32 %v73, %v372
  %v374 = vpop.f32.mrf.mxu0
  %v375 = vpop.f32.mrf.mxu0
  %v376 = vadd.f32 %v73, %v375
  %v377 = vpop.f32.mrf.mxu0
  %378 = vdwg.mxu0
  %v379 = vmax.f32 %v253, 0.0
  %v380 = vmax.f32 %v256, 0.0
  %v381 = vmax.f32 %v261, 0.0
  %v382 = vmax.f32 %v264, 0.0
  %v383 = vmax.f32 %v269, 0.0
  %v384 = vmax.f32 %v272, 0.0
  %v385 = vmax.f32 %v277, 0.0
  %v386 = vmax.f32 %v280, 0.0
  %v387 = vmax.f32 %v285, 0.0
  %v388 = vmax.f32 %v288, 0.0
  %v389 = vmax.f32 %v293, 0.0
  %v390 = vmax.f32 %v296, 0.0
  %v391 = vmax.f32 %v301, 0.0
  %v392 = vmax.f32 %v304, 0.0
  %v393 = vmax.f32 %v309, 0.0
  %v394 = vmax.f32 %v312, 0.0
  %v395 = vmax.f32 %v317, 0.0
  %v396 = vmax.f32 %v320, 0.0
  %v397 = vmax.f32 %v325, 0.0
  %v398 = vmax.f32 %v328, 0.0
  %v399 = vmax.f32 %v333, 0.0
  %v400 = vmax.f32 %v336, 0.0
  %v401 = vmax.f32 %v341, 0.0
  %v402 = vmax.f32 %v344, 0.0
  %v403 = vmax.f32 %v349, 0.0
  %v404 = vmax.f32 %v352, 0.0
  %v405 = vmax.f32 %v357, 0.0
  %v406 = vmax.f32 %v360, 0.0
  %v407 = vmax.f32 %v365, 0.0
  %v408 = vmax.f32 %v368, 0.0
  %v409 = vmax.f32 %v373, 0.0
  %v410 = vmax.f32 %v376, 0.0
  %v411 = vpack.c.bf16 %v380, %v379
  %v412 = vpack.c.bf16 %v382, %v381
  %v413 = vpack.c.bf16 %v384, %v383
  %v414 = vpack.c.bf16 %v386, %v385
  %v415 = vpack.c.bf16 %v388, %v387
  %v416 = vpack.c.bf16 %v390, %v389
  %v417 = vpack.c.bf16 %v392, %v391
  %v418 = vpack.c.bf16 %v394, %v393
  %v419 = vpack.c.bf16 %v396, %v395
  %v420 = vpack.c.bf16 %v398, %v397
  %v421 = vpack.c.bf16 %v400, %v399
  %v422 = vpack.c.bf16 %v402, %v401
  %v423 = vpack.c.bf16 %v404, %v403
  %v424 = vpack.c.bf16 %v406, %v405
  %v425 = vpack.c.bf16 %v408, %v407
  %v426 = vpack.c.bf16 %v410, %v409
  %v427 = vld [vmem:[%s2] sm:$0xf]
  %v428 = vld [vmem:[%s2 + $0x4] sm:$0xf]
  %v429 = vld [vmem:[%s2 + $0x8] sm:$0xf]
  %v430 = vld [vmem:[%s2 + $0xc] sm:$0xf]
  %v431 = vld [vmem:[%s2 + $0x10] sm:$0xf]
  %v432 = vld [vmem:[%s2 + $0x14] sm:$0xf]
  %v433 = vld [vmem:[%s2 + $0x18] sm:$0xf]
  %v434 = vld [vmem:[%s2 + $0x1c] sm:$0xf]
  %v435 = vld [vmem:[%s2 + $0x20] sm:$0xf]
  %v436 = vld [vmem:[%s2 + $0x24] sm:$0xf]
  %v437 = vld [vmem:[%s2 + $0x28] sm:$0xf]
  %v438 = vld [vmem:[%s2 + $0x2c] sm:$0xf]
  %v439 = vld [vmem:[%s2 + $0x30] sm:$0xf]
  %v440 = vld [vmem:[%s2 + $0x34] sm:$0xf]
  %v441 = vld [vmem:[%s2 + $0x38] sm:$0xf]
  %v442 = vld [vmem:[%s2 + $0x3c] sm:$0xf]
  %v443 = vlaneseq
  %v444 = vshrl.u32 %v443, 7
  %v445 = vsub.s32 1, %v444
  %v446 = vrot.slane %v21, %v445
  %v463 = vunpack.c.l.b16 %v427
  %v464 = vunpack.c.l.b16 %v428
  %v465 = vunpack.c.l.b16 %v429
  %v466 = vunpack.c.l.b16 %v430
  %v467 = vunpack.c.l.b16 %v431
  %v468 = vunpack.c.l.b16 %v432
  %v469 = vunpack.c.l.b16 %v433
  %v470 = vunpack.c.l.b16 %v434
  %v471 = vunpack.c.l.b16 %v435
  %v472 = vunpack.c.l.b16 %v436
  %v473 = vunpack.c.l.b16 %v437
  %v474 = vunpack.c.l.b16 %v438
  %v475 = vunpack.c.l.b16 %v439
  %v476 = vunpack.c.l.b16 %v440
  %v477 = vunpack.c.l.b16 %v441
  %v478 = vunpack.c.l.b16 %v442
  %v479 = vpack.c.b16 %v464, %v463
  %v480 = vpack.c.b16 %v466, %v465
  %v481 = vpack.c.b16 %v468, %v467
  %v482 = vpack.c.b16 %v470, %v469
  %v483 = vpack.c.b16 %v472, %v471
  %v484 = vpack.c.b16 %v474, %v473
  %v485 = vpack.c.b16 %v476, %v475
  %v486 = vpack.c.b16 %v478, %v477
  %495 = vmatprep.subr.bf16.mxu0 0
  %496 = vmatpush1.bf16.msra.mxu0 %v486
  %497 = vmatprep.subr.bf16.mxu0 0
  %498 = vmatpush1.bf16.msra.mxu0 %v485
  %499 = vmatprep.subr.bf16.mxu0 0
  %500 = vmatpush1.bf16.msra.mxu0 %v484
  %501 = vmatprep.subr.bf16.mxu0 0
  %502 = vmatpush1.bf16.msra.mxu0 %v483
  %503 = vmatprep.subr.bf16.mxu0 0
  %504 = vmatpush1.bf16.msra.mxu0 %v482
  %505 = vmatprep.subr.bf16.mxu0 0
  %506 = vmatpush1.bf16.msra.mxu0 %v481
  %507 = vmatprep.subr.bf16.mxu0 0
  %508 = vmatpush1.bf16.msra.mxu0 %v480
  %509 = vmatprep.subr.bf16.mxu0 0
  %510 = vmatpush1.bf16.msra.mxu0 %v479
  %511 = vmatprep.subr.bf16.mxu0 0
  %512 = vmatpush2.bf16.msra.mxu0 0
  %513 = vmatprep.subr.bf16.mxu0 0
  %514 = vmatpush2.bf16.msra.mxu0 0
  %515 = vmatprep.subr.bf16.mxu0 0
  %516 = vmatpush2.bf16.msra.mxu0 0
  %517 = vmatprep.subr.bf16.mxu0 0
  %518 = vmatpush2.bf16.msra.mxu0 0
  %519 = vmatprep.subr.bf16.mxu0 0
  %520 = vmatpush2.bf16.msra.mxu0 0
  %521 = vmatprep.subr.bf16.mxu0 0
  %522 = vmatpush2.bf16.msra.mxu0 0
  %523 = vmatprep.subr.bf16.mxu0 0
  %524 = vmatpush2.bf16.msra.mxu0 0
  %525 = vmatprep.subr.bf16.mxu0 0
  %526 = vmatpush2.bf16.msra.mxu0 0
  %527 = vmatprep.mubr.bf16.mxu0 0
  %528 = vmatmul.mubr.bf16.gmra.mxu0 %v411
  %v529 = vpop.f32.mrf.mxu0
  %v530 = vadd.f32 %v446, %v529
  %v531 = vpop.f32.mrf.mxu0
  %v532 = vpop.f32.mrf.mxu0
  %v533 = vadd.f32 %v446, %v532
  %v534 = vpop.f32.mrf.mxu0
  %535 = vmatprep.mubr.bf16.mxu0 0
  %536 = vmatmul.mubr.bf16.gmra.mxu0 %v412
  %v537 = vpop.f32.mrf.mxu0
  %v538 = vadd.f32 %v446, %v537
  %v539 = vpop.f32.mrf.mxu0
  %v540 = vpop.f32.mrf.mxu0
  %v541 = vadd.f32 %v446, %v540
  %v542 = vpop.f32.mrf.mxu0
  %543 = vmatprep.mubr.bf16.mxu0 0
  %544 = vmatmul.mubr.bf16.gmra.mxu0 %v413
  %v545 = vpop.f32.mrf.mxu0
  %v546 = vadd.f32 %v446, %v545
  %v547 = vpop.f32.mrf.mxu0
  %v548 = vpop.f32.mrf.mxu0
  %v549 = vadd.f32 %v446, %v548
  %v550 = vpop.f32.mrf.mxu0
  %551 = vmatprep.mubr.bf16.mxu0 0
  %552 = vmatmul.mubr.bf16.gmra.mxu0 %v414
  %v553 = vpop.f32.mrf.mxu0
  %v554 = vadd.f32 %v446, %v553
  %v555 = vpop.f32.mrf.mxu0
  %v556 = vpop.f32.mrf.mxu0
  %v557 = vadd.f32 %v446, %v556
  %v558 = vpop.f32.mrf.mxu0
  %559 = vmatprep.mubr.bf16.mxu0 0
  %560 = vmatmul.mubr.bf16.gmra.mxu0 %v415
  %v561 = vpop.f32.mrf.mxu0
  %v562 = vadd.f32 %v446, %v561
  %v563 = vpop.f32.mrf.mxu0
  %v564 = vpop.f32.mrf.mxu0
  %v565 = vadd.f32 %v446, %v564
  %v566 = vpop.f32.mrf.mxu0
  %567 = vmatprep.mubr.bf16.mxu0 0
  %568 = vmatmul.mubr.bf16.gmra.mxu0 %v416
  %v569 = vpop.f32.mrf.mxu0
  %v570 = vadd.f32 %v446, %v569
  %v571 = vpop.f32.mrf.mxu0
  %v572 = vpop.f32.mrf.mxu0
  %v573 = vadd.f32 %v446, %v572
  %v574 = vpop.f32.mrf.mxu0
  %575 = vmatprep.mubr.bf16.mxu0 0
  %576 = vmatmul.mubr.bf16.gmra.mxu0 %v417
  %v577 = vpop.f32.mrf.mxu0
  %v578 = vadd.f32 %v446, %v577
  %v579 = vpop.f32.mrf.mxu0
  %v580 = vpop.f32.mrf.mxu0
  %v581 = vadd.f32 %v446, %v580
  %v582 = vpop.f32.mrf.mxu0
  %583 = vmatprep.mubr.bf16.mxu0 0
  %584 = vmatmul.mubr.bf16.gmra.mxu0 %v418
  %v585 = vpop.f32.mrf.mxu0
  %v586 = vadd.f32 %v446, %v585
  %v587 = vpop.f32.mrf.mxu0
  %v588 = vpop.f32.mrf.mxu0
  %v589 = vadd.f32 %v446, %v588
  %v590 = vpop.f32.mrf.mxu0
  %591 = vmatprep.mubr.bf16.mxu0 0
  %592 = vmatmul.mubr.bf16.gmra.mxu0 %v419
  %v593 = vpop.f32.mrf.mxu0
  %v594 = vadd.f32 %v446, %v593
  %v595 = vpop.f32.mrf.mxu0
  %v596 = vpop.f32.mrf.mxu0
  %v597 = vadd.f32 %v446, %v596
  %v598 = vpop.f32.mrf.mxu0
  %599 = vmatprep.mubr.bf16.mxu0 0
  %600 = vmatmul.mubr.bf16.gmra.mxu0 %v420
  %v601 = vpop.f32.mrf.mxu0
  %v602 = vadd.f32 %v446, %v601
  %v603 = vpop.f32.mrf.mxu0
  %v604 = vpop.f32.mrf.mxu0
  %v605 = vadd.f32 %v446, %v604
  %v606 = vpop.f32.mrf.mxu0
  %607 = vmatprep.mubr.bf16.mxu0 0
  %608 = vmatmul.mubr.bf16.gmra.mxu0 %v421
  %v609 = vpop.f32.mrf.mxu0
  %v610 = vadd.f32 %v446, %v609
  %v611 = vpop.f32.mrf.mxu0
  %v612 = vpop.f32.mrf.mxu0
  %v613 = vadd.f32 %v446, %v612
  %v614 = vpop.f32.mrf.mxu0
  %615 = vmatprep.mubr.bf16.mxu0 0
  %616 = vmatmul.mubr.bf16.gmra.mxu0 %v422
  %v617 = vpop.f32.mrf.mxu0
  %v618 = vadd.f32 %v446, %v617
  %v619 = vpop.f32.mrf.mxu0
  %v620 = vpop.f32.mrf.mxu0
  %v621 = vadd.f32 %v446, %v620
  %v622 = vpop.f32.mrf.mxu0
  %623 = vmatprep.mubr.bf16.mxu0 0
  %624 = vmatmul.mubr.bf16.gmra.mxu0 %v423
  %v625 = vpop.f32.mrf.mxu0
  %v626 = vadd.f32 %v446, %v625
  %v627 = vpop.f32.mrf.mxu0
  %v628 = vpop.f32.mrf.mxu0
  %v629 = vadd.f32 %v446, %v628
  %v630 = vpop.f32.mrf.mxu0
  %631 = vmatprep.mubr.bf16.mxu0 0
  %632 = vmatmul.mubr.bf16.gmra.mxu0 %v424
  %v633 = vpop.f32.mrf.mxu0
  %v634 = vadd.f32 %v446, %v633
  %v635 = vpop.f32.mrf.mxu0
  %v636 = vpop.f32.mrf.mxu0
  %v637 = vadd.f32 %v446, %v636
  %v638 = vpop.f32.mrf.mxu0
  %639 = vmatprep.mubr.bf16.mxu0 0
  %640 = vmatmul.mubr.bf16.gmra.mxu0 %v425
  %v641 = vpop.f32.mrf.mxu0
  %v642 = vadd.f32 %v446, %v641
  %v643 = vpop.f32.mrf.mxu0
  %v644 = vpop.f32.mrf.mxu0
  %v645 = vadd.f32 %v446, %v644
  %v646 = vpop.f32.mrf.mxu0
  %647 = vmatprep.mubr.bf16.mxu0 0
  %648 = vmatmul.mubr.bf16.gmra.mxu0 %v426
  %v649 = vpop.f32.mrf.mxu0
  %v650 = vadd.f32 %v446, %v649
  %v651 = vpop.f32.mrf.mxu0
  %v652 = vpop.f32.mrf.mxu0
  %v653 = vadd.f32 %v446, %v652
  %v654 = vpop.f32.mrf.mxu0
  %655 = vdwg.mxu0
  %v656 = vmax.f32 %v530, 0.0
  %v657 = vmax.f32 %v533, 0.0
  %v658 = vmax.f32 %v538, 0.0
  %v659 = vmax.f32 %v541, 0.0
  %v660 = vmax.f32 %v546, 0.0
  %v661 = vmax.f32 %v549, 0.0
  %v662 = vmax.f32 %v554, 0.0
  %v663 = vmax.f32 %v557, 0.0
  %v664 = vmax.f32 %v562, 0.0
  %v665 = vmax.f32 %v565, 0.0
  %v666 = vmax.f32 %v570, 0.0
  %v667 = vmax.f32 %v573, 0.0
  %v668 = vmax.f32 %v578, 0.0
  %v669 = vmax.f32 %v581, 0.0
  %v670 = vmax.f32 %v586, 0.0
  %v671 = vmax.f32 %v589, 0.0
  %v672 = vmax.f32 %v594, 0.0
  %v673 = vmax.f32 %v597, 0.0
  %v674 = vmax.f32 %v602, 0.0
  %v675 = vmax.f32 %v605, 0.0
  %v676 = vmax.f32 %v610, 0.0
  %v677 = vmax.f32 %v613, 0.0
  %v678 = vmax.f32 %v618, 0.0
  %v679 = vmax.f32 %v621, 0.0
  %v680 = vmax.f32 %v626, 0.0
  %v681 = vmax.f32 %v629, 0.0
  %v682 = vmax.f32 %v634, 0.0
  %v683 = vmax.f32 %v637, 0.0
  %v684 = vmax.f32 %v642, 0.0
  %v685 = vmax.f32 %v645, 0.0
  %v686 = vmax.f32 %v650, 0.0
  %v687 = vmax.f32 %v653, 0.0
  %v688 = vpack.c.bf16 %v657, %v656
  %v689 = vpack.c.bf16 %v659, %v658
  %v690 = vpack.c.bf16 %v661, %v660
  %v691 = vpack.c.bf16 %v663, %v662
  %v692 = vpack.c.bf16 %v665, %v664
  %v693 = vpack.c.bf16 %v667, %v666
  %v694 = vpack.c.bf16 %v669, %v668
  %v695 = vpack.c.bf16 %v671, %v670
  %v696 = vpack.c.bf16 %v673, %v672
  %v697 = vpack.c.bf16 %v675, %v674
  %v698 = vpack.c.bf16 %v677, %v676
  %v699 = vpack.c.bf16 %v679, %v678
  %v700 = vpack.c.bf16 %v681, %v680
  %v701 = vpack.c.bf16 %v683, %v682
  %v702 = vpack.c.bf16 %v685, %v684
  %v703 = vpack.c.bf16 %v687, %v686
  %v704 = vld [vmem:[%s3] sm:$0xf]
  %v705 = vld [vmem:[%s3 + $0x4] sm:$0xf]
  %v706 = vld [vmem:[%s3 + $0x8] sm:$0xf]
  %v707 = vld [vmem:[%s3 + $0xc] sm:$0xf]
  %v708 = vld [vmem:[%s3 + $0x10] sm:$0xf]
  %v709 = vld [vmem:[%s3 + $0x14] sm:$0xf]
  %v710 = vld [vmem:[%s3 + $0x18] sm:$0xf]
  %v711 = vld [vmem:[%s3 + $0x1c] sm:$0xf]
  %v712 = vld [vmem:[%s3 + $0x20] sm:$0xf]
  %v713 = vld [vmem:[%s3 + $0x24] sm:$0xf]
  %v714 = vld [vmem:[%s3 + $0x28] sm:$0xf]
  %v715 = vld [vmem:[%s3 + $0x2c] sm:$0xf]
  %v716 = vld [vmem:[%s3 + $0x30] sm:$0xf]
  %v717 = vld [vmem:[%s3 + $0x34] sm:$0xf]
  %v718 = vld [vmem:[%s3 + $0x38] sm:$0xf]
  %v719 = vld [vmem:[%s3 + $0x3c] sm:$0xf]
  %v720 = vlaneseq
  %v721 = vshrl.u32 %v720, 7
  %v722 = vsub.s32 2, %v721
  %v723 = vrot.slane %v21, %v722
  %v740 = vunpack.c.l.b16 %v704
  %v741 = vunpack.c.l.b16 %v705
  %v742 = vunpack.c.l.b16 %v706
  %v743 = vunpack.c.l.b16 %v707
  %v744 = vunpack.c.l.b16 %v708
  %v745 = vunpack.c.l.b16 %v709
  %v746 = vunpack.c.l.b16 %v710
  %v747 = vunpack.c.l.b16 %v711
  %v748 = vunpack.c.l.b16 %v712
  %v749 = vunpack.c.l.b16 %v713
  %v750 = vunpack.c.l.b16 %v714
  %v751 = vunpack.c.l.b16 %v715
  %v752 = vunpack.c.l.b16 %v716
  %v753 = vunpack.c.l.b16 %v717
  %v754 = vunpack.c.l.b16 %v718
  %v755 = vunpack.c.l.b16 %v719
  %v756 = vpack.c.b16 %v741, %v740
  %v757 = vpack.c.b16 %v743, %v742
  %v758 = vpack.c.b16 %v745, %v744
  %v759 = vpack.c.b16 %v747, %v746
  %v760 = vpack.c.b16 %v749, %v748
  %v761 = vpack.c.b16 %v751, %v750
  %v762 = vpack.c.b16 %v753, %v752
  %v763 = vpack.c.b16 %v755, %v754
  %772 = vmatprep.subr.bf16.mxu0 0
  %773 = vmatpush1.bf16.msra.mxu0 %v763
  %774 = vmatprep.subr.bf16.mxu0 0
  %775 = vmatpush1.bf16.msra.mxu0 %v762
  %776 = vmatprep.subr.bf16.mxu0 0
  %777 = vmatpush1.bf16.msra.mxu0 %v761
  %778 = vmatprep.subr.bf16.mxu0 0
  %779 = vmatpush1.bf16.msra.mxu0 %v760
  %780 = vmatprep.subr.bf16.mxu0 0
  %781 = vmatpush1.bf16.msra.mxu0 %v759
  %782 = vmatprep.subr.bf16.mxu0 0
  %783 = vmatpush1.bf16.msra.mxu0 %v758
  %784 = vmatprep.subr.bf16.mxu0 0
  %785 = vmatpush1.bf16.msra.mxu0 %v757
  %786 = vmatprep.subr.bf16.mxu0 0
  %787 = vmatpush1.bf16.msra.mxu0 %v756
  %788 = vmatprep.subr.bf16.mxu0 0
  %789 = vmatpush2.bf16.msra.mxu0 0
  %790 = vmatprep.subr.bf16.mxu0 0
  %791 = vmatpush2.bf16.msra.mxu0 0
  %792 = vmatprep.subr.bf16.mxu0 0
  %793 = vmatpush2.bf16.msra.mxu0 0
  %794 = vmatprep.subr.bf16.mxu0 0
  %795 = vmatpush2.bf16.msra.mxu0 0
  %796 = vmatprep.subr.bf16.mxu0 0
  %797 = vmatpush2.bf16.msra.mxu0 0
  %798 = vmatprep.subr.bf16.mxu0 0
  %799 = vmatpush2.bf16.msra.mxu0 0
  %800 = vmatprep.subr.bf16.mxu0 0
  %801 = vmatpush2.bf16.msra.mxu0 0
  %802 = vmatprep.subr.bf16.mxu0 0
  %803 = vmatpush2.bf16.msra.mxu0 0
  %804 = vmatprep.mubr.bf16.mxu0 0
  %805 = vmatmul.mubr.bf16.gmra.mxu0 %v688
  %v806 = vpop.f32.mrf.mxu0
  %v807 = vadd.f32 %v723, %v806
  %v808 = vpop.f32.mrf.mxu0
  %v809 = vpop.f32.mrf.mxu0
  %v810 = vadd.f32 %v723, %v809
  %v811 = vpop.f32.mrf.mxu0
  %812 = vmatprep.mubr.bf16.mxu0 0
  %813 = vmatmul.mubr.bf16.gmra.mxu0 %v689
  %v814 = vpop.f32.mrf.mxu0
  %v815 = vadd.f32 %v723, %v814
  %v816 = vpop.f32.mrf.mxu0
  %v817 = vpop.f32.mrf.mxu0
  %v818 = vadd.f32 %v723, %v817
  %v819 = vpop.f32.mrf.mxu0
  %820 = vmatprep.mubr.bf16.mxu0 0
  %821 = vmatmul.mubr.bf16.gmra.mxu0 %v690
  %v822 = vpop.f32.mrf.mxu0
  %v823 = vadd.f32 %v723, %v822
  %v824 = vpop.f32.mrf.mxu0
  %v825 = vpop.f32.mrf.mxu0
  %v826 = vadd.f32 %v723, %v825
  %v827 = vpop.f32.mrf.mxu0
  %828 = vmatprep.mubr.bf16.mxu0 0
  %829 = vmatmul.mubr.bf16.gmra.mxu0 %v691
  %v830 = vpop.f32.mrf.mxu0
  %v831 = vadd.f32 %v723, %v830
  %v832 = vpop.f32.mrf.mxu0
  %v833 = vpop.f32.mrf.mxu0
  %v834 = vadd.f32 %v723, %v833
  %v835 = vpop.f32.mrf.mxu0
  %836 = vmatprep.mubr.bf16.mxu0 0
  %837 = vmatmul.mubr.bf16.gmra.mxu0 %v692
  %v838 = vpop.f32.mrf.mxu0
  %v839 = vadd.f32 %v723, %v838
  %v840 = vpop.f32.mrf.mxu0
  %v841 = vpop.f32.mrf.mxu0
  %v842 = vadd.f32 %v723, %v841
  %v843 = vpop.f32.mrf.mxu0
  %844 = vmatprep.mubr.bf16.mxu0 0
  %845 = vmatmul.mubr.bf16.gmra.mxu0 %v693
  %v846 = vpop.f32.mrf.mxu0
  %v847 = vadd.f32 %v723, %v846
  %v848 = vpop.f32.mrf.mxu0
  %v849 = vpop.f32.mrf.mxu0
  %v850 = vadd.f32 %v723, %v849
  %v851 = vpop.f32.mrf.mxu0
  %852 = vmatprep.mubr.bf16.mxu0 0
  %853 = vmatmul.mubr.bf16.gmra.mxu0 %v694
  %v854 = vpop.f32.mrf.mxu0
  %v855 = vadd.f32 %v723, %v854
  %v856 = vpop.f32.mrf.mxu0
  %v857 = vpop.f32.mrf.mxu0
  %v858 = vadd.f32 %v723, %v857
  %v859 = vpop.f32.mrf.mxu0
  %860 = vmatprep.mubr.bf16.mxu0 0
  %861 = vmatmul.mubr.bf16.gmra.mxu0 %v695
  %v862 = vpop.f32.mrf.mxu0
  %v863 = vadd.f32 %v723, %v862
  %v864 = vpop.f32.mrf.mxu0
  %v865 = vpop.f32.mrf.mxu0
  %v866 = vadd.f32 %v723, %v865
  %v867 = vpop.f32.mrf.mxu0
  %868 = vmatprep.mubr.bf16.mxu0 0
  %869 = vmatmul.mubr.bf16.gmra.mxu0 %v696
  %v870 = vpop.f32.mrf.mxu0
  %v871 = vadd.f32 %v723, %v870
  %v872 = vpop.f32.mrf.mxu0
  %v873 = vpop.f32.mrf.mxu0
  %v874 = vadd.f32 %v723, %v873
  %v875 = vpop.f32.mrf.mxu0
  %876 = vmatprep.mubr.bf16.mxu0 0
  %877 = vmatmul.mubr.bf16.gmra.mxu0 %v697
  %v878 = vpop.f32.mrf.mxu0
  %v879 = vadd.f32 %v723, %v878
  %v880 = vpop.f32.mrf.mxu0
  %v881 = vpop.f32.mrf.mxu0
  %v882 = vadd.f32 %v723, %v881
  %v883 = vpop.f32.mrf.mxu0
  %884 = vmatprep.mubr.bf16.mxu0 0
  %885 = vmatmul.mubr.bf16.gmra.mxu0 %v698
  %v886 = vpop.f32.mrf.mxu0
  %v887 = vadd.f32 %v723, %v886
  %v888 = vpop.f32.mrf.mxu0
  %v889 = vpop.f32.mrf.mxu0
  %v890 = vadd.f32 %v723, %v889
  %v891 = vpop.f32.mrf.mxu0
  %892 = vmatprep.mubr.bf16.mxu0 0
  %893 = vmatmul.mubr.bf16.gmra.mxu0 %v699
  %v894 = vpop.f32.mrf.mxu0
  %v895 = vadd.f32 %v723, %v894
  %v896 = vpop.f32.mrf.mxu0
  %v897 = vpop.f32.mrf.mxu0
  %v898 = vadd.f32 %v723, %v897
  %v899 = vpop.f32.mrf.mxu0
  %900 = vmatprep.mubr.bf16.mxu0 0
  %901 = vmatmul.mubr.bf16.gmra.mxu0 %v700
  %v902 = vpop.f32.mrf.mxu0
  %v903 = vadd.f32 %v723, %v902
  %v904 = vpop.f32.mrf.mxu0
  %v905 = vpop.f32.mrf.mxu0
  %v906 = vadd.f32 %v723, %v905
  %v907 = vpop.f32.mrf.mxu0
  %908 = vmatprep.mubr.bf16.mxu0 0
  %909 = vmatmul.mubr.bf16.gmra.mxu0 %v701
  %v910 = vpop.f32.mrf.mxu0
  %v911 = vadd.f32 %v723, %v910
  %v912 = vpop.f32.mrf.mxu0
  %v913 = vpop.f32.mrf.mxu0
  %v914 = vadd.f32 %v723, %v913
  %v915 = vpop.f32.mrf.mxu0
  %916 = vmatprep.mubr.bf16.mxu0 0
  %917 = vmatmul.mubr.bf16.gmra.mxu0 %v702
  %v918 = vpop.f32.mrf.mxu0
  %v919 = vadd.f32 %v723, %v918
  %v920 = vpop.f32.mrf.mxu0
  %v921 = vpop.f32.mrf.mxu0
  %v922 = vadd.f32 %v723, %v921
  %v923 = vpop.f32.mrf.mxu0
  %924 = vmatprep.mubr.bf16.mxu0 0
  %925 = vmatmul.mubr.bf16.gmra.mxu0 %v703
  %v926 = vpop.f32.mrf.mxu0
  %v927 = vadd.f32 %v723, %v926
  %v928 = vpop.f32.mrf.mxu0
  %v929 = vpop.f32.mrf.mxu0
  %v930 = vadd.f32 %v723, %v929
  %v931 = vpop.f32.mrf.mxu0
  %932 = vdwg.mxu0
  %v933 = vmax.f32 %v807, 0.0
  %v934 = vmax.f32 %v810, 0.0
  %v935 = vmax.f32 %v815, 0.0
  %v936 = vmax.f32 %v818, 0.0
  %v937 = vmax.f32 %v823, 0.0
  %v938 = vmax.f32 %v826, 0.0
  %v939 = vmax.f32 %v831, 0.0
  %v940 = vmax.f32 %v834, 0.0
  %v941 = vmax.f32 %v839, 0.0
  %v942 = vmax.f32 %v842, 0.0
  %v943 = vmax.f32 %v847, 0.0
  %v944 = vmax.f32 %v850, 0.0
  %v945 = vmax.f32 %v855, 0.0
  %v946 = vmax.f32 %v858, 0.0
  %v947 = vmax.f32 %v863, 0.0
  %v948 = vmax.f32 %v866, 0.0
  %v949 = vmax.f32 %v871, 0.0
  %v950 = vmax.f32 %v874, 0.0
  %v951 = vmax.f32 %v879, 0.0
  %v952 = vmax.f32 %v882, 0.0
  %v953 = vmax.f32 %v887, 0.0
  %v954 = vmax.f32 %v890, 0.0
  %v955 = vmax.f32 %v895, 0.0
  %v956 = vmax.f32 %v898, 0.0
  %v957 = vmax.f32 %v903, 0.0
  %v958 = vmax.f32 %v906, 0.0
  %v959 = vmax.f32 %v911, 0.0
  %v960 = vmax.f32 %v914, 0.0
  %v961 = vmax.f32 %v919, 0.0
  %v962 = vmax.f32 %v922, 0.0
  %v963 = vmax.f32 %v927, 0.0
  %v964 = vmax.f32 %v930, 0.0
  %965 = vst [vmem:[%s5] sm:$0xff] %v933
  %966 = vst [vmem:[%s5 + $0x8] sm:$0xff] %v934
  %967 = vst [vmem:[%s5 + $0x10] sm:$0xff] %v935
  %968 = vst [vmem:[%s5 + $0x18] sm:$0xff] %v936
  %969 = vst [vmem:[%s5 + $0x20] sm:$0xff] %v937
  %970 = vst [vmem:[%s5 + $0x28] sm:$0xff] %v938
  %971 = vst [vmem:[%s5 + $0x30] sm:$0xff] %v939
  %972 = vst [vmem:[%s5 + $0x38] sm:$0xff] %v940
  %973 = vst [vmem:[%s5 + $0x40] sm:$0xff] %v941
  %974 = vst [vmem:[%s5 + $0x48] sm:$0xff] %v942
  %975 = vst [vmem:[%s5 + $0x50] sm:$0xff] %v943
  %976 = vst [vmem:[%s5 + $0x58] sm:$0xff] %v944
  %977 = vst [vmem:[%s5 + $0x60] sm:$0xff] %v945
  %978 = vst [vmem:[%s5 + $0x68] sm:$0xff] %v946
  %979 = vst [vmem:[%s5 + $0x70] sm:$0xff] %v947
  %980 = vst [vmem:[%s5 + $0x78] sm:$0xff] %v948
  %981 = vst [vmem:[%s5 + $0x80] sm:$0xff] %v949
  %982 = vst [vmem:[%s5 + $0x88] sm:$0xff] %v950
  %983 = vst [vmem:[%s5 + $0x90] sm:$0xff] %v951
  %984 = vst [vmem:[%s5 + $0x98] sm:$0xff] %v952
  %985 = vst [vmem:[%s5 + $0xa0] sm:$0xff] %v953
  %986 = vst [vmem:[%s5 + $0xa8] sm:$0xff] %v954
  %987 = vst [vmem:[%s5 + $0xb0] sm:$0xff] %v955
  %988 = vst [vmem:[%s5 + $0xb8] sm:$0xff] %v956
  %989 = vst [vmem:[%s5 + $0xc0] sm:$0xff] %v957
  %990 = vst [vmem:[%s5 + $0xc8] sm:$0xff] %v958
  %991 = vst [vmem:[%s5 + $0xd0] sm:$0xff] %v959
  %992 = vst [vmem:[%s5 + $0xd8] sm:$0xff] %v960
  %993 = vst [vmem:[%s5 + $0xe0] sm:$0xff] %v961
  %994 = vst [vmem:[%s5 + $0xe8] sm:$0xff] %v962
  %995 = vst [vmem:[%s5 + $0xf0] sm:$0xff] %v963
  %996 = vst [vmem:[%s5 + $0xf8] sm:$0xff] %v964
  // Predicated region
  $region22: #{_lambda_.1} parent=0 // pred_check
    _
  $region23: #{_lambda_.1} parent=0 // pred_check_branch
    %998 = sbr.rel (0) target = $region25
  $region24: #{_lambda_.1} parent=0 // pred_region
    _
  $region25: #{_lambda_.1} parent=0 // pred_fallthru
    _
  // Predicated region
  $region26: #{_lambda_.1} parent=0 // pred_check
    _
  $region27: #{_lambda_.1} parent=0 // pred_check_branch
    %1000 = sbr.rel (0) target = $region29
  $region28: #{_lambda_.1} parent=0 // pred_region
    _
  $region29: #{_lambda_.1} parent=0 // pred_fallthru
    _

</llo_original>
